<compile_context>
chip_gen: v7x
topology: tpu7x:2x2x1
jax: 0.10.0
libtpu: 0.0.40
codegen_flags: <defaults>
</compile_context>

<pallas_src>
import functools

import jax
import jax.numpy as jnp
from jax import lax
from jax.experimental import pallas as pl
from jax.experimental.pallas import tpu as pltpu

_LANE = 128
_SUBLANE = 8


def _round_up(x, m):
    return (x + m - 1) // m * m


@functools.lru_cache(maxsize=None)
def _vmem_limit_bytes():
    """Generation-aware scoped-VMEM limit: ~3/4 of physical, capped at 100 MiB."""
    phys = 128 * 1024 * 1024  # v5e/v6e physical default
    try:
        info = pltpu.get_tpu_info()
        for attr in ("vmem_capacity_bytes", "vmem_size_bytes", "vmem_bytes"):
            v = getattr(info, attr, None)
            if v:
                phys = int(v)
                break
    except Exception:
        pass
    return min(phys * 3 // 4, 100 * 1024 * 1024)


def _make_patientnet_kernel(num_layers, batch_norm, in0):
    per = 4 if batch_norm else 2
    n_params = per * num_layers

    def kernel(*refs):
        x_ref = refs[0]                    # (tile_b, in0)   natural width
        params = refs[1:1 + n_params]
        o_ref = refs[1 + n_params]         # (tile_b, out_last) natural width
        xpad_ref = refs[2 + n_params]      # (tile_b, in_pad0) VMEM scratch

        # Lane-pad the natural-width input inside VMEM.  Pad lanes MUST be
        # explicitly zeroed (the DMA only fills the first in0 lanes).
        xpad_ref[...] = jnp.zeros_like(xpad_ref)
        xpad_ref[:, :in0] = x_ref[...]
        h = xpad_ref[...]

        for l in range(num_layers):
            w = params[per * l][...]       # [in_pad, out_pad] (pre-transposed)
            b = params[per * l + 1][...]   # [1, out_pad], f32
            # Native MXU feed: contract last axis of h with first axis of w.
            y = jnp.dot(h.astype(w.dtype), w,
                        preferred_element_type=jnp.float32) + b
            if batch_norm:
                g = params[per * l + 2][...]
                be = params[per * l + 3][...]
                # Training-mode BatchNorm1d, biased batch stats.  Two-pass
                # variance (y - mean)^2 is >= 0 by construction and matches
                # PyTorch; y is already resident in VMEM.
                mean = jnp.mean(y, axis=0, keepdims=True)
                d = y - mean
                var = jnp.mean(d * d, axis=0, keepdims=True)
                y = d * lax.rsqrt(var + 1e-5) * g + be
            if l < num_layers - 1:
                h = jnp.maximum(y, 0.0)
                # TODO(synk): nn.Dropout is identity here (eval mode); training
                # stochastic dropout (pltpu.prng_*) not implemented.
            else:
                h = jax.nn.sigmoid(y)      # logistic on EUP, no explicit divide
        # Natural-width output store: masked vst in VMEM, narrow HBM writeback.
        o_ref[...] = h[:, :o_ref.shape[-1]].astype(o_ref.dtype)

    return kernel


@functools.partial(jax.jit, static_argnames=("batch_norm", "mxu_dtype"))
def patient_net_forward(x, weights, biases, gammas, betas, *,
                        batch_norm=False, mxu_dtype=jnp.float32):
    """Fused PatientNet forward.

    x:       [B, in0]               float32
    weights: tuple of [out_l, in_l] (PyTorch nn.Linear layout)
    biases:  tuple of [out_l]
    gammas:  tuple of [out_l]       (used only if batch_norm)
    betas:   tuple of [out_l]       (used only if batch_norm)
    returns  [B, out_last] float32
    """
    num_layers = len(weights)
    B, in0 = x.shape
    out_sizes = [w.shape[0] for w in weights]
    in_sizes = [in0] + out_sizes[:-1]

    in_pads = [_round_up(s, _LANE) for s in in_sizes]
    out_pads = [_round_up(s, _LANE) for s in out_sizes]
    out_last = out_sizes[-1]

    if batch_norm:
        # Batch statistics need the whole batch resident in one block.
        # TODO(synk): for very large B (esp. v7x's 64 MiB VMEM) tile the batch
        # and accumulate per-layer sum/sumsq across grid steps (+ cross-core
        # combine on v7x); whole-batch block is fine for moderate B.
        tile_b = B
        b_eff = B
    else:
        # Sweep knob 512-1024: 512 reaches ~85% of HBM roofline for f32 streams.
        tile_b = min(512, _round_up(B, _SUBLANE))
        b_eff = _round_up(B, tile_b)

    f32 = jnp.float32
    x_in = x.astype(mxu_dtype)
    if b_eff != B:
        # Row-pad only (natural lane width kept) - tiny vs the old 128-lane pad.
        x_in = jnp.pad(x_in, ((0, b_eff - B), (0, 0)))

    args = [x_in]
    in_specs = [pl.BlockSpec((tile_b, in0), lambda i: (i, 0))]

    def _bcast_spec(shape):
        # Grid-invariant blocks (weights/bias/gamma/beta); block index never
        # changes so Pallas does not re-DMA them across grid steps.
        # (Optional: pipeline_mode=pl.Buffered(1) would also drop the second
        #  buffer - skipped, the blocks are tiny.)
        return pl.BlockSpec(shape, lambda i: (0, 0))

    for l in range(num_layers):
        o, i_ = out_sizes[l], in_sizes[l]
        op, ip = out_pads[l], in_pads[l]
        # Pre-transpose to [in_pad, out_pad]: native MXU RHS ([K, N]) feed.
        # Transpose + zero-pad fuse in XLA (free relative to the matmul).
        w_p = jnp.zeros((ip, op), mxu_dtype).at[:i_, :o].set(
            weights[l].T.astype(mxu_dtype))
        b_p = jnp.zeros((1, op), f32).at[0, :o].set(biases[l].astype(f32))
        args += [w_p, b_p]
        in_specs += [_bcast_spec((ip, op)), _bcast_spec((1, op))]
        if batch_norm:
            # Zero-padded gamma/beta keep padded columns exactly 0 through BN.
            g_p = jnp.zeros((1, op), f32).at[0, :o].set(gammas[l].astype(f32))
            be_p = jnp.zeros((1, op), f32).at[0, :o].set(betas[l].astype(f32))
            args += [g_p, be_p]
            in_specs += [_bcast_spec((1, op)), _bcast_spec((1, op))]

    out = pl.pallas_call(
        _make_patientnet_kernel(num_layers, batch_norm, in0),
        out_shape=jax.ShapeDtypeStruct((b_eff, out_last), f32),
        grid=(b_eff // tile_b,),
        in_specs=in_specs,
        out_specs=pl.BlockSpec((tile_b, out_last), lambda i: (i, 0)),
        scratch_shapes=[pltpu.VMEM((tile_b, in_pads[0]), mxu_dtype)],
        compiler_params=pltpu.CompilerParams(
            dimension_semantics=("arbitrary",) if batch_norm else ("parallel",),
            vmem_limit_bytes=_vmem_limit_bytes(),
        ),
    )(*args)
    return out[:B]


def init_params(key, layer_sizes):
    """nn.Linear default init (U(-1/sqrt(fan_in), 1/sqrt(fan_in))), BN defaults."""
    weights, biases, gammas, betas = [], [], [], []
    keys = jax.random.split(key, 2 * (len(layer_sizes) - 1))
    for l in range(len(layer_sizes) - 1):
        fan_in, fan_out = layer_sizes[l], layer_sizes[l + 1]
        bound = 1.0 / jnp.sqrt(jnp.float32(fan_in))
        kw, kb = keys[2 * l], keys[2 * l + 1]
        weights.append(
            jax.random.uniform(kw, (fan_out, fan_in), jnp.float32, -bound, bound))
        biases.append(
            jax.random.uniform(kb, (fan_out,), jnp.float32, -bound, bound))
        gammas.append(jnp.ones((fan_out,), jnp.float32))
        betas.append(jnp.zeros((fan_out,), jnp.float32))
    return tuple(weights), tuple(biases), tuple(gammas), tuple(betas)


if __name__ == "__main__":
    key = jax.random.PRNGKey(0)
    k_x, k_p = jax.random.split(key)

    # PatientNet: input 11 features -> hidden [32, 16] -> 1 output.
    nb_neur_per_hidden_layer = [32, 16]
    layer_sizes = [11] + nb_neur_per_hidden_layer + [1]
    batch = 8

    x = jax.random.normal(k_x, (batch, 11), jnp.float32)
    weights, biases, gammas, betas = init_params(k_p, layer_sizes)

    def ref_forward(x, batch_norm):
        h = x
        n = len(weights)
        for l in range(n):
            y = h @ weights[l].T + biases[l]
            if batch_norm:
                mu = y.mean(0, keepdims=True)
                var = ((y - mu) ** 2).mean(0, keepdims=True)
                y = (y - mu) / jnp.sqrt(var + 1e-5) * gammas[l] + betas[l]
            h = jnp.maximum(y, 0.0) if l < n - 1 else jax.nn.sigmoid(y)
        return h

    # f32 path, no batch-norm
    y = jax.block_until_ready(
        patient_net_forward(x, weights, biases, gammas, betas, batch_norm=False))
    assert y.shape == (batch, 1)
    assert jnp.allclose(y, ref_forward(x, False), atol=2e-5), "f32 no-BN mismatch"

    # f32 path, batch-norm (training-mode batch statistics)
    y_bn = jax.block_until_ready(
        patient_net_forward(x, weights, biases, gammas, betas, batch_norm=True))
    assert jnp.allclose(y_bn, ref_forward(x, True), atol=2e-5), "f32 BN mismatch"

    # bf16 MXU operands (valid on v5e/v6e/v7x), f32 epilogue
    y_bf16 = jax.block_until_ready(
        patient_net_forward(x, weights, biases, gammas, betas,
                            batch_norm=False, mxu_dtype=jnp.bfloat16))
    assert jnp.allclose(y_bf16, ref_forward(x, False), atol=5e-2), "bf16 mismatch"

    print("KERNEL_OK")
</pallas_src>

<mosaic_0001>
module attributes {stable_mosaic.version = 11 : i64} {
  func.func @kernel(%arg0: i32, %arg1: memref<8x11xf32, #tpu.memory_space<vmem>>, %arg2: memref<128x128xf32, #tpu.memory_space<vmem>>, %arg3: memref<1x128xf32, #tpu.memory_space<vmem>>, %arg4: memref<128x128xf32, #tpu.memory_space<vmem>>, %arg5: memref<1x128xf32, #tpu.memory_space<vmem>>, %arg6: memref<128x128xf32, #tpu.memory_space<vmem>>, %arg7: memref<1x128xf32, #tpu.memory_space<vmem>>, %arg8: memref<8x1xf32, #tpu.memory_space<vmem>>, %arg9: memref<8x128xf32, #tpu.memory_space<vmem>>) attributes {dimension_semantics = [#tpu.dimension_semantics<parallel>], iteration_bounds = array<i64: 1>, scalar_prefetch = 0 : i64, scratch_operands = 1 : i64, tpu.core_type = #tpu.core_type<tc>, window_params = [{transform_indices = @transform_0, window_bounds = array<i64: 8, 11>}, {pipeline_mode = #tpu.pipeline_mode<synchronous>, transform_indices = @transform_1, window_bounds = array<i64: 128, 128>}, {pipeline_mode = #tpu.pipeline_mode<synchronous>, transform_indices = @transform_2, window_bounds = array<i64: 1, 128>}, {pipeline_mode = #tpu.pipeline_mode<synchronous>, transform_indices = @transform_3, window_bounds = array<i64: 128, 128>}, {pipeline_mode = #tpu.pipeline_mode<synchronous>, transform_indices = @transform_4, window_bounds = array<i64: 1, 128>}, {pipeline_mode = #tpu.pipeline_mode<synchronous>, transform_indices = @transform_5, window_bounds = array<i64: 128, 128>}, {pipeline_mode = #tpu.pipeline_mode<synchronous>, transform_indices = @transform_6, window_bounds = array<i64: 1, 128>}, {transform_indices = @transform_7, window_bounds = array<i64: 8, 1>}]} {
    %cst = arith.constant 0.000000e+00 : f32
    %0 = vector.broadcast %cst : f32 to vector<8x128xf32>
    %c0 = arith.constant 0 : index
    %c0_0 = arith.constant 0 : index
    %1 = vector.load %arg9[%c0, %c0_0] : memref<8x128xf32, #tpu.memory_space<vmem>>, vector<8x128xf32>
    tpu.vector_store %arg9[%c0, %c0_0], %0 {strides = array<i32>} : memref<8x128xf32, #tpu.memory_space<vmem>>, vector<8x128xf32>,
    %c0_1 = arith.constant 0 : index
    %c0_2 = arith.constant 0 : index
    %2 = vector.load %arg1[%c0_1, %c0_2] : memref<8x11xf32, #tpu.memory_space<vmem>>, vector<8x11xf32>
    %c0_3 = arith.constant 0 : index
    %c0_4 = arith.constant 0 : index
    %3 = vector.load %arg9[%c0_3, %c0_4] : memref<8x128xf32, #tpu.memory_space<vmem>>, vector<8x11xf32>
    tpu.vector_store %arg9[%c0_3, %c0_4], %2 {strides = array<i32>} : memref<8x128xf32, #tpu.memory_space<vmem>>, vector<8x11xf32>,
    %c0_5 = arith.constant 0 : index
    %c0_6 = arith.constant 0 : index
    %4 = vector.load %arg9[%c0_5, %c0_6] : memref<8x128xf32, #tpu.memory_space<vmem>>, vector<8x128xf32>
    %c0_7 = arith.constant 0 : index
    %c0_8 = arith.constant 0 : index
    %5 = vector.load %arg2[%c0_7, %c0_8] : memref<128x128xf32, #tpu.memory_space<vmem>>, vector<128x128xf32>
    %c0_9 = arith.constant 0 : index
    %c0_10 = arith.constant 0 : index
    %6 = vector.load %arg3[%c0_9, %c0_10] : memref<1x128xf32, #tpu.memory_space<vmem>>, vector<1x128xf32>
    %cst_11 = arith.constant dense<0.000000e+00> : vector<8x128xf32>
    %7 = tpu.matmul %4, %5, %cst_11 {dimension_numbers = #tpu.dot_dimension_numbers<[1], [0], [0], [1], [0, 0, 1, 1], [], []>} : vector<8x128xf32>, vector<128x128xf32>, vector<8x128xf32> -> vector<8x128xf32>
    %8 = vector.broadcast %6 : vector<1x128xf32> to vector<8x128xf32>
    %9 = arith.addf %7, %8 : vector<8x128xf32>
    %cst_12 = arith.constant 0.000000e+00 : f32
    %10 = vector.broadcast %cst_12 : f32 to vector<8x128xf32>
    %11 = arith.maximumf %9, %10 : vector<8x128xf32>
    %c0_13 = arith.constant 0 : index
    %c0_14 = arith.constant 0 : index
    %12 = vector.load %arg4[%c0_13, %c0_14] : memref<128x128xf32, #tpu.memory_space<vmem>>, vector<128x128xf32>
    %c0_15 = arith.constant 0 : index
    %c0_16 = arith.constant 0 : index
    %13 = vector.load %arg5[%c0_15, %c0_16] : memref<1x128xf32, #tpu.memory_space<vmem>>, vector<1x128xf32>
    %cst_17 = arith.constant dense<0.000000e+00> : vector<8x128xf32>
    %14 = tpu.matmul %11, %12, %cst_17 {dimension_numbers = #tpu.dot_dimension_numbers<[1], [0], [0], [1], [0, 0, 1, 1], [], []>} : vector<8x128xf32>, vector<128x128xf32>, vector<8x128xf32> -> vector<8x128xf32>
    %15 = vector.broadcast %13 : vector<1x128xf32> to vector<8x128xf32>
    %16 = arith.addf %14, %15 : vector<8x128xf32>
    %cst_18 = arith.constant 0.000000e+00 : f32
    %17 = vector.broadcast %cst_18 : f32 to vector<8x128xf32>
    %18 = arith.maximumf %16, %17 : vector<8x128xf32>
    %c0_19 = arith.constant 0 : index
    %c0_20 = arith.constant 0 : index
    %19 = vector.load %arg6[%c0_19, %c0_20] : memref<128x128xf32, #tpu.memory_space<vmem>>, vector<128x128xf32>
    %c0_21 = arith.constant 0 : index
    %c0_22 = arith.constant 0 : index
    %20 = vector.load %arg7[%c0_21, %c0_22] : memref<1x128xf32, #tpu.memory_space<vmem>>, vector<1x128xf32>
    %cst_23 = arith.constant dense<0.000000e+00> : vector<8x128xf32>
    %21 = tpu.matmul %18, %19, %cst_23 {dimension_numbers = #tpu.dot_dimension_numbers<[1], [0], [0], [1], [0, 0, 1, 1], [], []>} : vector<8x128xf32>, vector<128x128xf32>, vector<8x128xf32> -> vector<8x128xf32>
    %22 = vector.broadcast %20 : vector<1x128xf32> to vector<8x128xf32>
    %23 = arith.addf %21, %22 : vector<8x128xf32>
    %24 = arith.negf %23 : vector<8x128xf32>
    %25 = math.exp %24 : vector<8x128xf32>
    %cst_24 = arith.constant 1.000000e+00 : f32
    %26 = vector.broadcast %cst_24 : f32 to vector<8x128xf32>
    %27 = arith.addf %26, %25 : vector<8x128xf32>
    %28 = arith.divf %26, %27 : vector<8x128xf32>
    %29 = vector.extract_strided_slice %28 {offsets = [0, 0], sizes = [8, 1], strides = [1, 1]} : vector<8x128xf32> to vector<8x1xf32>
    %c0_25 = arith.constant 0 : index
    %c0_26 = arith.constant 0 : index
    %30 = vector.load %arg8[%c0_25, %c0_26] : memref<8x1xf32, #tpu.memory_space<vmem>>, vector<8x1xf32>
    tpu.vector_store %arg8[%c0_25, %c0_26], %29 {strides = array<i32>} : memref<8x1xf32, #tpu.memory_space<vmem>>, vector<8x1xf32>,
    return
  }
  func.func @transform_0(%arg0: i32) -> (i32, i32) {
    %c0_i32 = arith.constant 0 : i32
    %c0_i32_0 = arith.constant 0 : i32
    return %arg0, %c0_i32 : i32, i32
  }
  func.func @transform_1(%arg0: i32) -> (i32, i32) {
    %c0_i32 = arith.constant 0 : i32
    %c0_i32_0 = arith.constant 0 : i32
    %c0_i32_1 = arith.constant 0 : i32
    return %c0_i32, %c0_i32_0 : i32, i32
  }
  func.func @transform_2(%arg0: i32) -> (i32, i32) {
    %c0_i32 = arith.constant 0 : i32
    %c0_i32_0 = arith.constant 0 : i32
    %c0_i32_1 = arith.constant 0 : i32
    return %c0_i32, %c0_i32_0 : i32, i32
  }
  func.func @transform_3(%arg0: i32) -> (i32, i32) {
    %c0_i32 = arith.constant 0 : i32
    %c0_i32_0 = arith.constant 0 : i32
    %c0_i32_1 = arith.constant 0 : i32
    return %c0_i32, %c0_i32_0 : i32, i32
  }
  func.func @transform_4(%arg0: i32) -> (i32, i32) {
    %c0_i32 = arith.constant 0 : i32
    %c0_i32_0 = arith.constant 0 : i32
    %c0_i32_1 = arith.constant 0 : i32
    return %c0_i32, %c0_i32_0 : i32, i32
  }
  func.func @transform_5(%arg0: i32) -> (i32, i32) {
    %c0_i32 = arith.constant 0 : i32
    %c0_i32_0 = arith.constant 0 : i32
    %c0_i32_1 = arith.constant 0 : i32
    return %c0_i32, %c0_i32_0 : i32, i32
  }
  func.func @transform_6(%arg0: i32) -> (i32, i32) {
    %c0_i32 = arith.constant 0 : i32
    %c0_i32_0 = arith.constant 0 : i32
    %c0_i32_1 = arith.constant 0 : i32
    return %c0_i32, %c0_i32_0 : i32, i32
  }
  func.func @transform_7(%arg0: i32) -> (i32, i32) {
    %c0_i32 = arith.constant 0 : i32
    %c0_i32_0 = arith.constant 0 : i32
    return %arg0, %c0_i32 : i32, i32
  }
}

</mosaic_0001>

<llo_original>
// kernel: patient_net_forward.1
$region0: #{patient_net_forward.1}
  #allocation0 [shape = 'u32[]', space=smem, size = 0x4, offset = 0x4, fixed_abs, tag = 'smem constant byte address 0x4 - core index']
  #allocation1 [shape = 'u32[144,128]{1,0:T(1,128)}', space=vmem, size = 0x12000, scoped, tag = 'internal scratch']
  #allocation2 [shape = 'f32[8,128]{1,0:T(8,128)}', space=vmem, size = 0x1000, scoped, tag = 'scratch operand']
  %s0 = inlined_call_operand.hbm [shape: f32[8,11], index: 0, kind: input, shape index: {}]
  %s1 = inlined_call_operand.hbm [shape: f32[128,128], index: 1, kind: input, shape index: {}]
  %s2 = inlined_call_operand.hbm [shape: f32[1,128], index: 2, kind: input, shape index: {}]
  %s3 = inlined_call_operand.hbm [shape: f32[128,128], index: 3, kind: input, shape index: {}]
  %s4 = inlined_call_operand.hbm [shape: f32[1,128], index: 4, kind: input, shape index: {}]
  %s5 = inlined_call_operand.hbm [shape: f32[128,128], index: 5, kind: input, shape index: {}]
  %s6 = inlined_call_operand.hbm [shape: f32[1,128], index: 6, kind: input, shape index: {}]
  %s7 = inlined_call_operand.hbm [shape: f32[8,1], index: 7, kind: output, shape index: {}]
  %s8 = sld [smem:[#allocation0]]
  $region66: #{patient_net_forward.1} parent=0
    _
  %s10 = ssub.s32 1, %s8
  %s11 = scalar_select 0, %s10, %s8
  $region1: #{patient_net_forward.1} parent=0
    #allocation3 [shape = 'u8[4096]{0}', space=vmem, size = 0x1000, scoped, tag = 'input window, operand 0, single buffered']
    #allocation4 [shape = 's32[1]{0}', space=sflag, size = 0x4, scoped, tag = 'scoped memory for patient_net_forward.1']
    #allocation5 [shape = 's32[1]{0}', space=sflag, size = 0x4, scoped, tag = 'scoped memory for patient_net_forward.1']
    #allocation6 [shape = 'u8[65536]{0}', space=vmem, size = 0x10000, scoped, tag = 'input window, operand 1, single buffered']
    #allocation7 [shape = 's32[1]{0}', space=sflag, size = 0x4, scoped, tag = 'scoped memory for patient_net_forward.1']
    #allocation8 [shape = 'u8[512]{0}', space=vmem, size = 0x400, scoped, tag = 'input window, operand 2, single buffered']
    #allocation9 [shape = 'u8[65536]{0}', space=vmem, size = 0x10000, scoped, tag = 'input window, operand 3, single buffered']
    #allocation10 [shape = 's32[1]{0}', space=sflag, size = 0x4, scoped, tag = 'scoped memory for patient_net_forward.1']
    #allocation11 [shape = 'u8[512]{0}', space=vmem, size = 0x400, scoped, tag = 'input window, operand 4, single buffered']
    #allocation12 [shape = 'u8[65536]{0}', space=vmem, size = 0x10000, scoped, tag = 'input window, operand 5, single buffered']
    #allocation13 [shape = 's32[1]{0}', space=sflag, size = 0x4, scoped, tag = 'scoped memory for patient_net_forward.1']
    #allocation14 [shape = 'u8[512]{0}', space=vmem, size = 0x400, scoped, tag = 'input window, operand 6, single buffered']
    #allocation15 [shape = 'u8[4096]{0}', space=vmem, size = 0x1000, scoped, tag = 'output window, operand 0, single buffered']
    %12 = vsyncpa [#allocation4], 0
    %13 = vsyncpa [#allocation7], 0
    %14 = vsyncpa [#allocation10], 0
    %15 = vsyncpa [#allocation13], 0
    %16 = vsyncpa [#allocation5], 0
    // Predicated region
    $region2: #{patient_net_forward.1} parent=1 // pred_check
      _
    $region3: #{patient_net_forward.1} parent=1 // pred_check_branch
      %18 = sbr.rel (0) target = $region5
    $region4: #{patient_net_forward.1} parent=1 // pred_region
      %s20 = ssub.s32 128, 128
      %21 = vsyncadd [#allocation4], %s20
      %s23 = sshll.u32 [#allocation3], 4
      %s24 = int_to_ptr.vmem [resolvable:$true] %s23
      %26 = dma.hbm_to_vmem [thread:$0]  %s0, 128, %s24, [#allocation4]
    $region5: #{patient_net_forward.1} parent=1 // pred_fallthru
      _
    // Predicated region
    $region6: #{patient_net_forward.1} parent=1 // pred_check
      _
    $region7: #{patient_net_forward.1} parent=1 // pred_check_branch
      %28 = sbr.rel (0) target = $region9
    $region8: #{patient_net_forward.1} parent=1 // pred_region
      %s30 = ssub.s32 2048, 2048
      %31 = vsyncadd [#allocation7], %s30
      %s32 = sshll.u32 [#allocation6], 4
      %s33 = int_to_ptr.vmem [resolvable:$true] %s32
      %38 = dma.hbm_to_vmem [thread:$0]  %s1, 2048, %s33, [#allocation7], 128, 128, 8
    $region9: #{patient_net_forward.1} parent=1 // pred_fallthru
      _
    // Predicated region
    $region10: #{patient_net_forward.1} parent=1 // pred_check
      _
    $region11: #{patient_net_forward.1} parent=1 // pred_check_branch
      %40 = sbr.rel (0) target = $region13
    $region12: #{patient_net_forward.1} parent=1 // pred_region
      %s42 = ssub.s32 16, 16
      %43 = vsyncadd [#allocation7], %s42
      %s45 = sshll.u32 [#allocation8], 4
      %s46 = int_to_ptr.vmem [resolvable:$true] %s45
      %48 = dma.hbm_to_vmem [thread:$0]  %s2, 16, %s46, [#allocation7]
    $region13: #{patient_net_forward.1} parent=1 // pred_fallthru
      _
    // Predicated region
    $region14: #{patient_net_forward.1} parent=1 // pred_check
      _
    $region15: #{patient_net_forward.1} parent=1 // pred_check_branch
      %50 = sbr.rel (0) target = $region17
    $region16: #{patient_net_forward.1} parent=1 // pred_region
      %s52 = ssub.s32 2048, 2048
      %53 = vsyncadd [#allocation10], %s52
      %s54 = sshll.u32 [#allocation9], 4
      %s55 = int_to_ptr.vmem [resolvable:$true] %s54
      %60 = dma.hbm_to_vmem [thread:$0]  %s3, 2048, %s55, [#allocation10], 128, 128, 8
    $region17: #{patient_net_forward.1} parent=1 // pred_fallthru
      _
    // Predicated region
    $region18: #{patient_net_forward.1} parent=1 // pred_check
      _
    $region19: #{patient_net_forward.1} parent=1 // pred_check_branch
      %62 = sbr.rel (0) target = $region21
    $region20: #{patient_net_forward.1} parent=1 // pred_region
      %s64 = ssub.s32 16, 16
      %65 = vsyncadd [#allocation10], %s64
      %s67 = sshll.u32 [#allocation11], 4
      %s68 = int_to_ptr.vmem [resolvable:$true] %s67
      %70 = dma.hbm_to_vmem [thread:$0]  %s4, 16, %s68, [#allocation10]
    $region21: #{patient_net_forward.1} parent=1 // pred_fallthru
      _
    // Predicated region
    $region22: #{patient_net_forward.1} parent=1 // pred_check
      _
    $region23: #{patient_net_forward.1} parent=1 // pred_check_branch
      %72 = sbr.rel (0) target = $region25
    $region24: #{patient_net_forward.1} parent=1 // pred_region
      %s74 = ssub.s32 2048, 2048
      %75 = vsyncadd [#allocation13], %s74
      %s76 = sshll.u32 [#allocation12], 4
      %s77 = int_to_ptr.vmem [resolvable:$true] %s76
      %82 = dma.hbm_to_vmem [thread:$0]  %s5, 2048, %s77, [#allocation13], 128, 128, 8
    $region25: #{patient_net_forward.1} parent=1 // pred_fallthru
      _
    // Predicated region
    $region26: #{patient_net_forward.1} parent=1 // pred_check
      _
    $region27: #{patient_net_forward.1} parent=1 // pred_check_branch
      %84 = sbr.rel (0) target = $region29
    $region28: #{patient_net_forward.1} parent=1 // pred_region
      %s86 = ssub.s32 16, 16
      %87 = vsyncadd [#allocation13], %s86
      %s89 = sshll.u32 [#allocation14], 4
      %s90 = int_to_ptr.vmem [resolvable:$true] %s89
      %92 = dma.hbm_to_vmem [thread:$0]  %s6, 16, %s90, [#allocation13]
    $region29: #{patient_net_forward.1} parent=1 // pred_fallthru
      _
    // Predicated region
    $region30: #{patient_net_forward.1} parent=1 // pred_check
      _
    $region31: #{patient_net_forward.1} parent=1 // pred_check_branch
      %94 = sbr.rel (0) target = $region33
    $region32: #{patient_net_forward.1} parent=1 // pred_region
      %95 = dma.done [#allocation4], 128
    $region33: #{patient_net_forward.1} parent=1 // pred_fallthru
      _
    // Predicated region
    $region34: #{patient_net_forward.1} parent=1 // pred_check
      _
    $region35: #{patient_net_forward.1} parent=1 // pred_check_branch
      %97 = sbr.rel (0) target = $region37
    $region36: #{patient_net_forward.1} parent=1 // pred_region
      %98 = dma.done [#allocation7], 2048
    $region37: #{patient_net_forward.1} parent=1 // pred_fallthru
      _
    // Predicated region
    $region38: #{patient_net_forward.1} parent=1 // pred_check
      _
    $region39: #{patient_net_forward.1} parent=1 // pred_check_branch
      %100 = sbr.rel (0) target = $region41
    $region40: #{patient_net_forward.1} parent=1 // pred_region
      %101 = dma.done [#allocation7], 16
    $region41: #{patient_net_forward.1} parent=1 // pred_fallthru
      _
    // Predicated region
    $region42: #{patient_net_forward.1} parent=1 // pred_check
      _
    $region43: #{patient_net_forward.1} parent=1 // pred_check_branch
      %103 = sbr.rel (0) target = $region45
    $region44: #{patient_net_forward.1} parent=1 // pred_region
      %104 = dma.done [#allocation10], 2048
    $region45: #{patient_net_forward.1} parent=1 // pred_fallthru
      _
    // Predicated region
    $region46: #{patient_net_forward.1} parent=1 // pred_check
      _
    $region47: #{patient_net_forward.1} parent=1 // pred_check_branch
      %106 = sbr.rel (0) target = $region49
    $region48: #{patient_net_forward.1} parent=1 // pred_region
      %107 = dma.done [#allocation10], 16
    $region49: #{patient_net_forward.1} parent=1 // pred_fallthru
      _
    // Predicated region
    $region50: #{patient_net_forward.1} parent=1 // pred_check
      _
    $region51: #{patient_net_forward.1} parent=1 // pred_check_branch
      %109 = sbr.rel (0) target = $region53
    $region52: #{patient_net_forward.1} parent=1 // pred_region
      %110 = dma.done [#allocation13], 2048
    $region53: #{patient_net_forward.1} parent=1 // pred_fallthru
      _
    // Predicated region
    $region54: #{patient_net_forward.1} parent=1 // pred_check
      _
    $region55: #{patient_net_forward.1} parent=1 // pred_check_branch
      %112 = sbr.rel (0) target = $region57
    $region56: #{patient_net_forward.1} parent=1 // pred_region
      %113 = dma.done [#allocation13], 16
    $region57: #{patient_net_forward.1} parent=1 // pred_fallthru
      _
    %114 = vst [vmem:[#allocation2] sm:$0xff] 0.0
    %v115 = vld [vmem:[#allocation3] sm:$0xff]
    %vm116 = vcmask 89088
    %117 = vst.msk [vmem:[#allocation2] sm:$0xff] %vm116, %v115
    %v118 = vld [vmem:[#allocation2] sm:$0xff]
    %v119 = vld [vmem:[#allocation6] sm:$0xff]
    %v120 = vld [vmem:[#allocation6 + $0x8] sm:$0xff]
    %v121 = vld [vmem:[#allocation6 + $0x10] sm:$0xff]
    %v122 = vld [vmem:[#allocation6 + $0x18] sm:$0xff]
    %v123 = vld [vmem:[#allocation6 + $0x20] sm:$0xff]
    %v124 = vld [vmem:[#allocation6 + $0x28] sm:$0xff]
    %v125 = vld [vmem:[#allocation6 + $0x30] sm:$0xff]
    %v126 = vld [vmem:[#allocation6 + $0x38] sm:$0xff]
    %v127 = vld [vmem:[#allocation6 + $0x40] sm:$0xff]
    %v128 = vld [vmem:[#allocation6 + $0x48] sm:$0xff]
    %v129 = vld [vmem:[#allocation6 + $0x50] sm:$0xff]
    %v130 = vld [vmem:[#allocation6 + $0x58] sm:$0xff]
    %v131 = vld [vmem:[#allocation6 + $0x60] sm:$0xff]
    %v132 = vld [vmem:[#allocation6 + $0x68] sm:$0xff]
    %v133 = vld [vmem:[#allocation6 + $0x70] sm:$0xff]
    %v134 = vld [vmem:[#allocation6 + $0x78] sm:$0xff]
    %v135 = vld [vmem:[#allocation8] sm:$0x1]
    %v137 = vlaneseq
    %v138 = vshrl.u32 %v137, 7
    %v139 = vsub.s32 0, %v138
    %v140 = vrot.slane %v135, %v139
    %142 = vmatprep.subr.mxu0 0.0
    %143 = vmatpush1.msra.mxu0 %v119
    %144 = vmatprep.subr.mxu0 0.0
    %145 = vmatpush1.msra.mxu0 %v120
    %146 = vmatprep.subr.mxu0 0.0
    %147 = vmatpush1.msra.mxu0 %v121
    %148 = vmatprep.subr.mxu0 0.0
    %149 = vmatpush1.msra.mxu0 %v122
    %150 = vmatprep.subr.mxu0 0.0
    %151 = vmatpush1.msra.mxu0 %v123
    %152 = vmatprep.subr.mxu0 0.0
    %153 = vmatpush1.msra.mxu0 %v124
    %154 = vmatprep.subr.mxu0 0.0
    %155 = vmatpush1.msra.mxu0 %v125
    %156 = vmatprep.subr.mxu0 0.0
    %157 = vmatpush1.msra.mxu0 %v126
    %158 = vmatprep.subr.mxu0 0.0
    %159 = vmatpush1.msra.mxu0 %v127
    %160 = vmatprep.subr.mxu0 0.0
    %161 = vmatpush1.msra.mxu0 %v128
    %162 = vmatprep.subr.mxu0 0.0
    %163 = vmatpush1.msra.mxu0 %v129
    %164 = vmatprep.subr.mxu0 0.0
    %165 = vmatpush1.msra.mxu0 %v130
    %166 = vmatprep.subr.mxu0 0.0
    %167 = vmatpush1.msra.mxu0 %v131
    %168 = vmatprep.subr.mxu0 0.0
    %169 = vmatpush1.msra.mxu0 %v132
    %170 = vmatprep.subr.mxu0 0.0
    %171 = vmatpush1.msra.mxu0 %v133
    %172 = vmatprep.subr.mxu0 0.0
    %173 = vmatpush1.msra.mxu0 %v134
    %174 = vmatprep.subr.mxu0 0.0
    %175 = vmatpush1.msra.mxu0 0.0
    %176 = vmatprep.subr.mxu0 0.0
    %177 = vmatpush1.msra.mxu0 0.0
    %178 = vmatprep.subr.mxu0 0.0
    %179 = vmatpush1.msra.mxu0 0.0
    %180 = vmatprep.subr.mxu0 0.0
    %181 = vmatpush1.msra.mxu0 0.0
    %182 = vmatprep.subr.mxu0 0.0
    %183 = vmatpush1.msra.mxu0 0.0
    %184 = vmatprep.subr.mxu0 0.0
    %185 = vmatpush1.msra.mxu0 0.0
    %186 = vmatprep.subr.mxu0 0.0
    %187 = vmatpush1.msra.mxu0 0.0
    %188 = vmatprep.subr.mxu0 0.0
    %189 = vmatpush1.msra.mxu0 0.0
    %190 = vmatprep.subr.mxu0 0.0
    %191 = vmatpush1.msra.mxu0 0.0
    %192 = vmatprep.subr.mxu0 0.0
    %193 = vmatpush1.msra.mxu0 0.0
    %194 = vmatprep.subr.mxu0 0.0
    %195 = vmatpush1.msra.mxu0 0.0
    %196 = vmatprep.subr.mxu0 0.0
    %197 = vmatpush1.msra.mxu0 0.0
    %198 = vmatprep.subr.mxu0 0.0
    %199 = vmatpush1.msra.mxu0 0.0
    %200 = vmatprep.subr.mxu0 0.0
    %201 = vmatpush1.msra.mxu0 0.0
    %202 = vmatprep.subr.mxu0 0.0
    %203 = vmatpush1.msra.mxu0 0.0
    %204 = vmatprep.subr.mxu0 0.0
    %205 = vmatpush1.msra.mxu0 0.0
    %206 = vmatprep.mubr.f32.mxu0 0.0
    %207 = vmatmul.mubr.f32.gmra.mrb[0].mxu0 %v118
    %v208 = vpop.f32.mrb[0].mxu0
    %v209 = vadd.f32 %v140, %v208
    %v210 = vpop.f32.mrb[0].mxu0
    %211 = vdwg.mxu0
    %v212 = vmax.f32 %v209, 0.0
    %v213 = vld [vmem:[#allocation9] sm:$0xff]
    %v214 = vld [vmem:[#allocation9 + $0x8] sm:$0xff]
    %v215 = vld [vmem:[#allocation9 + $0x10] sm:$0xff]
    %v216 = vld [vmem:[#allocation9 + $0x18] sm:$0xff]
    %v217 = vld [vmem:[#allocation9 + $0x20] sm:$0xff]
    %v218 = vld [vmem:[#allocation9 + $0x28] sm:$0xff]
    %v219 = vld [vmem:[#allocation9 + $0x30] sm:$0xff]
    %v220 = vld [vmem:[#allocation9 + $0x38] sm:$0xff]
    %v221 = vld [vmem:[#allocation9 + $0x40] sm:$0xff]
    %v222 = vld [vmem:[#allocation9 + $0x48] sm:$0xff]
    %v223 = vld [vmem:[#allocation9 + $0x50] sm:$0xff]
    %v224 = vld [vmem:[#allocation9 + $0x58] sm:$0xff]
    %v225 = vld [vmem:[#allocation9 + $0x60] sm:$0xff]
    %v226 = vld [vmem:[#allocation9 + $0x68] sm:$0xff]
    %v227 = vld [vmem:[#allocation9 + $0x70] sm:$0xff]
    %v228 = vld [vmem:[#allocation9 + $0x78] sm:$0xff]
    %v229 = vld [vmem:[#allocation11] sm:$0x1]
    %v231 = vlaneseq
    %v232 = vshrl.u32 %v231, 7
    %v233 = vsub.s32 0, %v232
    %v234 = vrot.slane %v229, %v233
    %236 = vmatprep.subr.mxu0 0.0
    %237 = vmatpush1.msra.mxu0 %v213
    %238 = vmatprep.subr.mxu0 0.0
    %239 = vmatpush1.msra.mxu0 %v214
    %240 = vmatprep.subr.mxu0 0.0
    %241 = vmatpush1.msra.mxu0 %v215
    %242 = vmatprep.subr.mxu0 0.0
    %243 = vmatpush1.msra.mxu0 %v216
    %244 = vmatprep.subr.mxu0 0.0
    %245 = vmatpush1.msra.mxu0 %v217
    %246 = vmatprep.subr.mxu0 0.0
    %247 = vmatpush1.msra.mxu0 %v218
    %248 = vmatprep.subr.mxu0 0.0
    %249 = vmatpush1.msra.mxu0 %v219
    %250 = vmatprep.subr.mxu0 0.0
    %251 = vmatpush1.msra.mxu0 %v220
    %252 = vmatprep.subr.mxu0 0.0
    %253 = vmatpush1.msra.mxu0 %v221
    %254 = vmatprep.subr.mxu0 0.0
    %255 = vmatpush1.msra.mxu0 %v222
    %256 = vmatprep.subr.mxu0 0.0
    %257 = vmatpush1.msra.mxu0 %v223
    %258 = vmatprep.subr.mxu0 0.0
    %259 = vmatpush1.msra.mxu0 %v224
    %260 = vmatprep.subr.mxu0 0.0
    %261 = vmatpush1.msra.mxu0 %v225
    %262 = vmatprep.subr.mxu0 0.0
    %263 = vmatpush1.msra.mxu0 %v226
    %264 = vmatprep.subr.mxu0 0.0
    %265 = vmatpush1.msra.mxu0 %v227
    %266 = vmatprep.subr.mxu0 0.0
    %267 = vmatpush1.msra.mxu0 %v228
    %268 = vmatprep.subr.mxu0 0.0
    %269 = vmatpush1.msra.mxu0 0.0
    %270 = vmatprep.subr.mxu0 0.0
    %271 = vmatpush1.msra.mxu0 0.0
    %272 = vmatprep.subr.mxu0 0.0
    %273 = vmatpush1.msra.mxu0 0.0
    %274 = vmatprep.subr.mxu0 0.0
    %275 = vmatpush1.msra.mxu0 0.0
    %276 = vmatprep.subr.mxu0 0.0
    %277 = vmatpush1.msra.mxu0 0.0
    %278 = vmatprep.subr.mxu0 0.0
    %279 = vmatpush1.msra.mxu0 0.0
    %280 = vmatprep.subr.mxu0 0.0
    %281 = vmatpush1.msra.mxu0 0.0
    %282 = vmatprep.subr.mxu0 0.0
    %283 = vmatpush1.msra.mxu0 0.0
    %284 = vmatprep.subr.mxu0 0.0
    %285 = vmatpush1.msra.mxu0 0.0
    %286 = vmatprep.subr.mxu0 0.0
    %287 = vmatpush1.msra.mxu0 0.0
    %288 = vmatprep.subr.mxu0 0.0
    %289 = vmatpush1.msra.mxu0 0.0
    %290 = vmatprep.subr.mxu0 0.0
    %291 = vmatpush1.msra.mxu0 0.0
    %292 = vmatprep.subr.mxu0 0.0
    %293 = vmatpush1.msra.mxu0 0.0
    %294 = vmatprep.subr.mxu0 0.0
    %295 = vmatpush1.msra.mxu0 0.0
    %296 = vmatprep.subr.mxu0 0.0
    %297 = vmatpush1.msra.mxu0 0.0
    %298 = vmatprep.subr.mxu0 0.0
    %299 = vmatpush1.msra.mxu0 0.0
    %300 = vmatprep.mubr.f32.mxu0 0.0
    %301 = vmatmul.mubr.f32.gmra.mrb[0].mxu0 %v212
    %v302 = vpop.f32.mrb[0].mxu0
    %v303 = vadd.f32 %v234, %v302
    %v304 = vpop.f32.mrb[0].mxu0
    %305 = vdwg.mxu0
    %v306 = vmax.f32 %v303, 0.0
    %v307 = vld [vmem:[#allocation12] sm:$0xff]
    %v308 = vld [vmem:[#allocation12 + $0x8] sm:$0xff]
    %v309 = vld [vmem:[#allocation12 + $0x10] sm:$0xff]
    %v310 = vld [vmem:[#allocation12 + $0x18] sm:$0xff]
    %v311 = vld [vmem:[#allocation12 + $0x20] sm:$0xff]
    %v312 = vld [vmem:[#allocation12 + $0x28] sm:$0xff]
    %v313 = vld [vmem:[#allocation12 + $0x30] sm:$0xff]
    %v314 = vld [vmem:[#allocation12 + $0x38] sm:$0xff]
    %v315 = vld [vmem:[#allocation12 + $0x40] sm:$0xff]
    %v316 = vld [vmem:[#allocation12 + $0x48] sm:$0xff]
    %v317 = vld [vmem:[#allocation12 + $0x50] sm:$0xff]
    %v318 = vld [vmem:[#allocation12 + $0x58] sm:$0xff]
    %v319 = vld [vmem:[#allocation12 + $0x60] sm:$0xff]
    %v320 = vld [vmem:[#allocation12 + $0x68] sm:$0xff]
    %v321 = vld [vmem:[#allocation12 + $0x70] sm:$0xff]
    %v322 = vld [vmem:[#allocation12 + $0x78] sm:$0xff]
    %v323 = vld [vmem:[#allocation14] sm:$0x1]
    %v325 = vlaneseq
    %v326 = vshrl.u32 %v325, 7
    %v327 = vsub.s32 0, %v326
    %v328 = vrot.slane %v323, %v327
    %330 = vmatprep.subr.mxu0 0.0
    %331 = vmatpush1.msra.mxu0 %v307
    %332 = vmatprep.subr.mxu0 0.0
    %333 = vmatpush1.msra.mxu0 %v308
    %334 = vmatprep.subr.mxu0 0.0
    %335 = vmatpush1.msra.mxu0 %v309
    %336 = vmatprep.subr.mxu0 0.0
    %337 = vmatpush1.msra.mxu0 %v310
    %338 = vmatprep.subr.mxu0 0.0
    %339 = vmatpush1.msra.mxu0 %v311
    %340 = vmatprep.subr.mxu0 0.0
    %341 = vmatpush1.msra.mxu0 %v312
    %342 = vmatprep.subr.mxu0 0.0
    %343 = vmatpush1.msra.mxu0 %v313
    %344 = vmatprep.subr.mxu0 0.0
    %345 = vmatpush1.msra.mxu0 %v314
    %346 = vmatprep.subr.mxu0 0.0
    %347 = vmatpush1.msra.mxu0 %v315
    %348 = vmatprep.subr.mxu0 0.0
    %349 = vmatpush1.msra.mxu0 %v316
    %350 = vmatprep.subr.mxu0 0.0
    %351 = vmatpush1.msra.mxu0 %v317
    %352 = vmatprep.subr.mxu0 0.0
    %353 = vmatpush1.msra.mxu0 %v318
    %354 = vmatprep.subr.mxu0 0.0
    %355 = vmatpush1.msra.mxu0 %v319
    %356 = vmatprep.subr.mxu0 0.0
    %357 = vmatpush1.msra.mxu0 %v320
    %358 = vmatprep.subr.mxu0 0.0
    %359 = vmatpush1.msra.mxu0 %v321
    %360 = vmatprep.subr.mxu0 0.0
    %361 = vmatpush1.msra.mxu0 %v322
    %362 = vmatprep.subr.mxu0 0.0
    %363 = vmatpush1.msra.mxu0 0.0
    %364 = vmatprep.subr.mxu0 0.0
    %365 = vmatpush1.msra.mxu0 0.0
    %366 = vmatprep.subr.mxu0 0.0
    %367 = vmatpush1.msra.mxu0 0.0
    %368 = vmatprep.subr.mxu0 0.0
    %369 = vmatpush1.msra.mxu0 0.0
    %370 = vmatprep.subr.mxu0 0.0
    %371 = vmatpush1.msra.mxu0 0.0
    %372 = vmatprep.subr.mxu0 0.0
    %373 = vmatpush1.msra.mxu0 0.0
    %374 = vmatprep.subr.mxu0 0.0
    %375 = vmatpush1.msra.mxu0 0.0
    %376 = vmatprep.subr.mxu0 0.0
    %377 = vmatpush1.msra.mxu0 0.0
    %378 = vmatprep.subr.mxu0 0.0
    %379 = vmatpush1.msra.mxu0 0.0
    %380 = vmatprep.subr.mxu0 0.0
    %381 = vmatpush1.msra.mxu0 0.0
    %382 = vmatprep.subr.mxu0 0.0
    %383 = vmatpush1.msra.mxu0 0.0
    %384 = vmatprep.subr.mxu0 0.0
    %385 = vmatpush1.msra.mxu0 0.0
    %386 = vmatprep.subr.mxu0 0.0
    %387 = vmatpush1.msra.mxu0 0.0
    %388 = vmatprep.subr.mxu0 0.0
    %389 = vmatpush1.msra.mxu0 0.0
    %390 = vmatprep.subr.mxu0 0.0
    %391 = vmatpush1.msra.mxu0 0.0
    %392 = vmatprep.subr.mxu0 0.0
    %393 = vmatpush1.msra.mxu0 0.0
    %394 = vmatprep.mubr.f32.mxu0 0.0
    %395 = vmatmul.mubr.f32.gmra.mrb[0].mxu0 %v306
    %v396 = vpop.f32.mrb[0].mxu0
    %v397 = vadd.f32 %v328, %v396
    %v398 = vpop.f32.mrb[0].mxu0
    %399 = vdwg.mxu0
    %v400 = vxor.u32 %v397, 2147483648
    %v401 = vmul.f32 %v400, 1.442695
    %v402 = vpow.pop %v401
    %v403 = vadd.f32 %v402, 1.0
    %v404 = vrcp.pop %v403
    %v405 = vmul.f32 1.0, %v404
    %vm406 = vcmask 7168
    %407 = vst.msk [vmem:[#allocation15] sm:$0xff] %vm406, %v405
    // Predicated region
    $region58: #{patient_net_forward.1} parent=1 // pred_check
      _
    $region59: #{patient_net_forward.1} parent=1 // pred_check_branch
      %409 = sbr.rel (0) target = $region61
    $region60: #{patient_net_forward.1} parent=1 // pred_region
      %s411 = ssub.s32 128, 128
      %412 = vsyncadd [#allocation5], %s411
      %s414 = sshll.u32 [#allocation15], 4
      %s415 = int_to_ptr.vmem [resolvable:$true] %s414
      %417 = dma.vmem_to_hbm [thread:$0]  %s415, 128, %s7, [#allocation5]
    $region61: #{patient_net_forward.1} parent=1 // pred_fallthru
      _
    // Predicated region
    $region62: #{patient_net_forward.1} parent=1 // pred_check
      _
    $region63: #{patient_net_forward.1} parent=1 // pred_check_branch
      %419 = sbr.rel (0) target = $region65
    $region64: #{patient_net_forward.1} parent=1 // pred_region
      %420 = dma.done [#allocation5], 128
    $region65: #{patient_net_forward.1} parent=1 // pred_fallthru
      _
    %421 = vsyncpa [#allocation4], 1
    %422 = vsyncpa [#allocation7], 1
    %423 = vsyncpa [#allocation10], 1
    %424 = vsyncpa [#allocation13], 1
    %425 = vsyncpa [#allocation5], 1

</llo_original>
